<compile_context>
chip_gen: v6e
topology: v6e:2x2x1
jax: 0.10.0
libtpu: 0.0.40
codegen_flags: <defaults>
</compile_context>

<pallas_src>
import math

import jax
import jax.numpy as jnp
from jax.experimental import pallas as pl
from jax.experimental.pallas import tpu as pltpu

_LANE = 128


def _round_up(x, m):
    return ((x + m - 1) // m) * m


def _col_tiles(out_dim):
    """(tn, padded O).  O padded to a lane multiple -> unmasked, lane-dense stores."""
    op0 = _round_up(out_dim, _LANE)
    tn = min(512, op0)
    return tn, _round_up(op0, tn)


def _k_tiles(hidden, compute_dtype):
    """(tk, padded H).  Full-dim block when H fits (no pad), else lane-multiple tiles."""
    cap = 2048 if jnp.dtype(compute_dtype) == jnp.dtype(jnp.bfloat16) else 1024
    if hidden <= cap:
        return hidden, hidden
    return cap, _round_up(hidden, cap)


def _make_kernel(activation, apply_dropout):
    def body(x_ref, w_ref, b_ref, m_ref, o_ref, acc_ref):
        k = pl.program_id(2)
        last = pl.num_programs(2) - 1          # computed OUTSIDE pl.when bodies

        @pl.when(k == 0)
        def _():
            acc_ref[...] = jnp.zeros_like(acc_ref)

        # Canonical (tm, tk) x (tk, tn) MXU contraction, f32 accumulation.
        acc_ref[...] += jnp.dot(x_ref[...], w_ref[...],
                                preferred_element_type=jnp.float32)

        @pl.when(k == last)
        def _():
            out = acc_ref[...] + b_ref[...]     # f32 epilogue (v5e-safe)
            if activation == "relu":
                out = jnp.maximum(out, 0.0)
            # activation None -> identity (matches nn.Identity()).
            if apply_dropout:
                out = out * m_ref[...]          # mask already scaled by 1/keep_prob
            o_ref[...] = out.astype(o_ref.dtype)

    if apply_dropout:
        def kernel(x_ref, w_ref, b_ref, m_ref, o_ref, acc_ref):
            body(x_ref, w_ref, b_ref, m_ref, o_ref, acc_ref)
    else:
        def kernel(x_ref, w_ref, b_ref, o_ref, acc_ref):
            body(x_ref, w_ref, b_ref, None, o_ref, acc_ref)
    return kernel


def prepare_params(weight, bias, compute_dtype=jnp.bfloat16):
    """One-time relayout of the PyTorch (O, H) weight to padded (H, O) + cast.

    Done once per parameter set so the per-call wrapper never transposes/pads/casts
    the weight in HBM again.
    """
    O, H = weight.shape
    tn, Op = _col_tiles(O)
    tk, Hp = _k_tiles(H, compute_dtype)

    w_t = weight.T                                        # (H, O) canonical layout
    if (Hp, Op) != (H, O):
        w_t = jnp.pad(w_t, ((0, Hp - H), (0, Op - O)))
    w_t = w_t.astype(compute_dtype)

    b = bias if Op == O else jnp.pad(bias, (0, Op - O))
    b2d = b.reshape(1, Op).astype(jnp.float32)

    return {"w": w_t, "b": b2d, "H": H, "O": O, "tn": tn, "tk": tk,
            "compute_dtype": jnp.dtype(compute_dtype)}


def single_mlp_forward(x, params, *, activation="relu",
                       dropout_rate=0.0, training=False, rng=None):
    """Pallas equivalent of SingleMLP.forward.

    x: (B, H) float32.  params: output of prepare_params (weight in (H, O) layout).
    """
    w, b2d = params["w"], params["b"]
    H, O = params["H"], params["O"]
    tn, tk = params["tn"], params["tk"]
    cdt = params["compute_dtype"]

    B, Hx = x.shape
    assert Hx == H, "weight/input hidden size mismatch"
    Hp, Op = w.shape

    # M tiling.
    tm = min(512, _round_up(B, 8))
    Bp = _round_up(B, tm)
    # v7x has 2 TensorCores: if the parallel (M, N) axes degenerate to a single block,
    # split M so both cores get work.
    if Bp // tm == 1 and Op // tn == 1 and tm % 16 == 0:
        tm //= 2

    x_c = x
    if (Bp, Hp) != (B, H):
        # Only triggers for awkward B / very large non-multiple H.
        # TODO(synk): handle ragged M/K tails in-kernel to avoid this per-call pad.
        x_c = jnp.pad(x_c, ((0, Bp - B), (0, Hp - H)))
    if x_c.dtype != cdt:
        x_c = x_c.astype(cdt)

    apply_dropout = (float(dropout_rate) > 0.0) and bool(training)
    keep_prob = 1.0 - float(dropout_rate)

    inputs = [x_c, w, b2d]
    in_specs = [
        pl.BlockSpec((tm, tk), lambda i, j, k: (i, k)),   # x  (B, H)
        pl.BlockSpec((tk, tn), lambda i, j, k: (k, j)),   # w  (H, O) canonical
        pl.BlockSpec((1, tn), lambda i, j, k: (0, j)),    # bias
    ]
    if apply_dropout:
        if rng is None:
            rng = jax.random.PRNGKey(0)
        keep = jax.random.bernoulli(rng, keep_prob, (Bp, Op))
        mask = keep.astype(jnp.float32) * (1.0 / keep_prob)   # 0 or 1/keep_prob
        inputs.append(mask)
        in_specs.append(pl.BlockSpec((tm, tn), lambda i, j, k: (i, j)))

    kernel = _make_kernel(activation, apply_dropout)
    grid = (Bp // tm, Op // tn, Hp // tk)
    gm, gn = grid[0], grid[1]
    itemsize = jnp.dtype(cdt).itemsize

    cost = pl.CostEstimate(
        flops=2 * Bp * Hp * Op,
        transcendentals=0,
        bytes_accessed=(Bp * Hp * itemsize * gn          # x re-read per N block
                        + Hp * Op * itemsize * gm        # w re-read per M block
                        + Bp * Op * 4                    # output write
                        + (Bp * Op * 4 if apply_dropout else 0)),
    )

    out_p = pl.pallas_call(
        kernel,
        out_shape=jax.ShapeDtypeStruct((Bp, Op), jnp.float32),
        grid_spec=pltpu.PrefetchScalarGridSpec(
            num_scalar_prefetch=0,
            grid=grid,
            in_specs=in_specs,
            out_specs=pl.BlockSpec((tm, tn), lambda i, j, k: (i, j)),
            scratch_shapes=[pltpu.VMEM((tm, tn), jnp.float32)],
        ),
        compiler_params=pltpu.CompilerParams(
            dimension_semantics=("parallel", "parallel", "arbitrary"),
            vmem_limit_bytes=48 * 1024 * 1024,
        ),
        cost_estimate=cost,
    )(*inputs)

    if (Bp, Op) != (B, O):
        out_p = out_p[:B, :O]
    return out_p


def init_params(key, hidden_units, out_dim):
    """Deterministic xavier_uniform_ weight, zero bias (matches module __init__)."""
    limit = math.sqrt(6.0 / (hidden_units + out_dim))
    w = jax.random.uniform(key, (out_dim, hidden_units),
                           minval=-limit, maxval=limit, dtype=jnp.float32)
    b = jnp.zeros((out_dim,), dtype=jnp.float32)
    return w, b


if __name__ == "__main__":
    batch, hidden_units, out_dim = 8, 32, 16

    key = jax.random.PRNGKey(0)
    kx, kw = jax.random.split(key)
    x = jax.random.normal(kx, (batch, hidden_units), dtype=jnp.float32)
    weight, bias = init_params(kw, hidden_units, out_dim)

    params = prepare_params(weight, bias, compute_dtype=jnp.bfloat16)

    # Eval path (activation=relu, dropout inactive).
    y = single_mlp_forward(x, params, activation="relu",
                           dropout_rate=0.0, training=False)
    y = jax.block_until_ready(y)

    # Reference with the same bf16 operand rounding (f32 accumulation).
    xr = x.astype(jnp.bfloat16).astype(jnp.float32)
    wr = weight.astype(jnp.bfloat16).astype(jnp.float32)
    ref = jnp.maximum(xr @ wr.T + bias, 0.0)
    assert y.shape == (batch, out_dim), f"bad shape {y.shape}"
    assert jnp.allclose(y, ref, atol=2e-2, rtol=2e-2), "mismatch vs reference (eval)"

    # Training path (dropout): every element must be 0 or ~ref/(1-p).
    p = 0.5
    y_drop = single_mlp_forward(x, params, activation="relu",
                                dropout_rate=p, training=True,
                                rng=jax.random.PRNGKey(123))
    y_drop = jax.block_until_ready(y_drop)
    scaled = ref / (1.0 - p)
    ok = (jnp.isclose(y_drop, 0.0, atol=1e-6)
          | jnp.isclose(y_drop, scaled, atol=5e-2, rtol=5e-2))
    assert y_drop.shape == (batch, out_dim)
    assert bool(jnp.all(ok)), "dropout output not in {0, ref/(1-p)}"

    print("KERNEL_OK")
</pallas_src>

<mosaic_0001>
module attributes {stable_mosaic.version = 11 : i64} {
  func.func @kernel(%arg0: i32, %arg1: i32, %arg2: i32, %arg3: memref<8x32xbf16, #tpu.memory_space<vmem>>, %arg4: memref<32x128xbf16, #tpu.memory_space<vmem>>, %arg5: memref<1x128xf32, #tpu.memory_space<vmem>>, %arg6: memref<8x128xf32, #tpu.memory_space<vmem>>, %arg7: memref<8x128xf32, #tpu.memory_space<vmem>>) attributes {dimension_semantics = [#tpu.dimension_semantics<parallel>, #tpu.dimension_semantics<parallel>, #tpu.dimension_semantics<arbitrary>], iteration_bounds = array<i64: 1, 1, 1>, scalar_prefetch = 0 : i64, scratch_operands = 1 : i64, tpu.core_type = #tpu.core_type<tc>, window_params = [{transform_indices = @transform_0, window_bounds = array<i64: 8, 32>}, {transform_indices = @transform_1, window_bounds = array<i64: 32, 128>}, {transform_indices = @transform_2, window_bounds = array<i64: 1, 128>}, {transform_indices = @transform_3, window_bounds = array<i64: 8, 128>}]} {
    %c0_i32 = arith.constant 0 : i32
    %0 = arith.cmpi eq, %arg2, %c0_i32 : i32
    %1 = arith.extui %0 : i1 to i32
    %c0_i32_0 = arith.constant 0 : i32
    %2 = arith.cmpi ne, %1, %c0_i32_0 : i32
    scf.if %2 {
      %cst_10 = arith.constant 0.000000e+00 : f32
      %12 = vector.broadcast %cst_10 : f32 to vector<8x128xf32>
      %c0_11 = arith.constant 0 : index
      %c0_12 = arith.constant 0 : index
      %13 = vector.load %arg7[%c0_11, %c0_12] : memref<8x128xf32, #tpu.memory_space<vmem>>, vector<8x128xf32>
      tpu.vector_store %arg7[%c0_11, %c0_12], %12 {strides = array<i32>} : memref<8x128xf32, #tpu.memory_space<vmem>>, vector<8x128xf32>,
    } else {
    }
    %c0 = arith.constant 0 : index
    %c0_1 = arith.constant 0 : index
    %3 = vector.load %arg7[%c0, %c0_1] : memref<8x128xf32, #tpu.memory_space<vmem>>, vector<8x128xf32>
    %c0_2 = arith.constant 0 : index
    %c0_3 = arith.constant 0 : index
    %4 = vector.load %arg3[%c0_2, %c0_3] : memref<8x32xbf16, #tpu.memory_space<vmem>>, vector<8x32xbf16>
    %c0_4 = arith.constant 0 : index
    %c0_5 = arith.constant 0 : index
    %5 = vector.load %arg4[%c0_4, %c0_5] : memref<32x128xbf16, #tpu.memory_space<vmem>>, vector<32x128xbf16>
    %cst = arith.constant dense<0.000000e+00> : vector<8x128xf32>
    %6 = tpu.matmul %4, %5, %cst {dimension_numbers = #tpu.dot_dimension_numbers<[1], [0], [0], [1], [0, 0, 1, 1], [], []>} : vector<8x32xbf16>, vector<32x128xbf16>, vector<8x128xf32> -> vector<8x128xf32>
    %7 = arith.addf %3, %6 : vector<8x128xf32>
    %c0_6 = arith.constant 0 : index
    %c0_7 = arith.constant 0 : index
    %8 = vector.load %arg7[%c0_6, %c0_7] : memref<8x128xf32, #tpu.memory_space<vmem>>, vector<8x128xf32>
    tpu.vector_store %arg7[%c0_6, %c0_7], %7 {strides = array<i32>} : memref<8x128xf32, #tpu.memory_space<vmem>>, vector<8x128xf32>,
    %c0_i32_8 = arith.constant 0 : i32
    %9 = arith.cmpi eq, %arg2, %c0_i32_8 : i32
    %10 = arith.extui %9 : i1 to i32
    %c0_i32_9 = arith.constant 0 : i32
    %11 = arith.cmpi ne, %10, %c0_i32_9 : i32
    scf.if %11 {
      %c0_10 = arith.constant 0 : index
      %c0_11 = arith.constant 0 : index
      %12 = vector.load %arg7[%c0_10, %c0_11] : memref<8x128xf32, #tpu.memory_space<vmem>>, vector<8x128xf32>
      %c0_12 = arith.constant 0 : index
      %c0_13 = arith.constant 0 : index
      %13 = vector.load %arg5[%c0_12, %c0_13] : memref<1x128xf32, #tpu.memory_space<vmem>>, vector<1x128xf32>
      %14 = vector.broadcast %13 : vector<1x128xf32> to vector<8x128xf32>
      %15 = arith.addf %12, %14 : vector<8x128xf32>
      %cst_14 = arith.constant 0.000000e+00 : f32
      %16 = vector.broadcast %cst_14 : f32 to vector<8x128xf32>
      %17 = arith.maximumf %15, %16 : vector<8x128xf32>
      %c0_15 = arith.constant 0 : index
      %c0_16 = arith.constant 0 : index
      %18 = vector.load %arg6[%c0_15, %c0_16] : memref<8x128xf32, #tpu.memory_space<vmem>>, vector<8x128xf32>
      tpu.vector_store %arg6[%c0_15, %c0_16], %17 {strides = array<i32>} : memref<8x128xf32, #tpu.memory_space<vmem>>, vector<8x128xf32>,
    } else {
    }
    return
  }
  func.func @transform_0(%arg0: i32, %arg1: i32, %arg2: i32) -> (i32, i32) {
    %c0_i32 = arith.constant 0 : i32
    return %arg0, %arg2 : i32, i32
  }
  func.func @transform_1(%arg0: i32, %arg1: i32, %arg2: i32) -> (i32, i32) {
    %c0_i32 = arith.constant 0 : i32
    return %arg2, %arg1 : i32, i32
  }
  func.func @transform_2(%arg0: i32, %arg1: i32, %arg2: i32) -> (i32, i32) {
    %c0_i32 = arith.constant 0 : i32
    %c0_i32_0 = arith.constant 0 : i32
    return %c0_i32, %arg1 : i32, i32
  }
  func.func @transform_3(%arg0: i32, %arg1: i32, %arg2: i32) -> (i32, i32) {
    %c0_i32 = arith.constant 0 : i32
    return %arg0, %arg1 : i32, i32
  }
}

</mosaic_0001>

<llo_original>
// kernel: tpu_custom_call.1
$region0: #{tpu_custom_call.1}
  #allocation0 [shape = 'u32[]', space=smem, size = 0x4, offset = 0x4, fixed_abs, tag = 'smem constant byte address 0x4 - core index']
  #allocation1 [shape = 'u32[144,128]{1,0:T(1,128)}', space=vmem, size = 0x12000, scoped, tag = 'internal scratch']
  #allocation2 [shape = 'f32[8,128]{1,0:T(8,128)}', space=vmem, size = 0x1000, scoped, tag = 'scratch operand']
  %s0 = inlined_call_operand.hbm [shape: bf16[8,32], index: 0, kind: input, shape index: {}]
  %s1 = inlined_call_operand.hbm [shape: bf16[32,128], index: 1, kind: input, shape index: {}]
  %s2 = inlined_call_operand.vmem [shape: f32[1,128], index: 2, kind: input, shape index: {}]
  %s3 = inlined_call_operand.hbm [shape: f32[8,128], index: 3, kind: output, shape index: {}]
  %s4 = sld [smem:[#allocation0]]
  $region38: #{tpu_custom_call.1} parent=0
    _
  %s6 = ssub.s32 1, %s4
  %s7 = scalar_select 0, %s6, %s4
  $region1: #{tpu_custom_call.1} parent=0
    #allocation3 [shape = 'u8[2048]{0}', space=vmem, size = 0x800, scoped, tag = 'input window, operand 0, single buffered']
    #allocation4 [shape = 's32[1]{0}', space=sflag, size = 0x4, scoped, tag = 'scoped memory for tpu_custom_call.1']
    #allocation5 [shape = 's32[1]{0}', space=sflag, size = 0x4, scoped, tag = 'scoped memory for tpu_custom_call.1']
    #allocation6 [shape = 'u8[8192]{0}', space=vmem, size = 0x2000, scoped, tag = 'input window, operand 1, single buffered']
    #allocation7 [shape = 's32[1]{0}', space=sflag, size = 0x4, scoped, tag = 'scoped memory for tpu_custom_call.1']
    #allocation8 [shape = 'u8[4096]{0}', space=vmem, size = 0x1000, scoped, tag = 'output window, operand 0, single buffered']
    %8 = vsyncpa [#allocation4], 0
    %9 = vsyncpa [#allocation7], 0
    %10 = vsyncpa [#allocation5], 0
    // Predicated region
    $region2: #{tpu_custom_call.1} parent=1 // pred_check
      _
    $region3: #{tpu_custom_call.1} parent=1 // pred_check_branch
      %12 = sbr.rel (0) target = $region5
    $region4: #{tpu_custom_call.1} parent=1 // pred_region
      %s14 = ssub.s32 64, 64
      %15 = vsyncadd [#allocation4], %s14
      %s17 = sshll.u32 [#allocation3], 4
      %s18 = int_to_ptr.vmem [resolvable:$true] %s17
      %20 = dma.hbm_to_vmem [thread:$0]  %s0, 64, %s18, [#allocation4]
    $region5: #{tpu_custom_call.1} parent=1 // pred_fallthru
      _
    // Predicated region
    $region6: #{tpu_custom_call.1} parent=1 // pred_check
      _
    $region7: #{tpu_custom_call.1} parent=1 // pred_check_branch
      %22 = sbr.rel (0) target = $region9
    $region8: #{tpu_custom_call.1} parent=1 // pred_region
      %s24 = ssub.s32 256, 256
      %25 = vsyncadd [#allocation7], %s24
      %s26 = sshll.u32 [#allocation6], 4
      %s27 = int_to_ptr.vmem [resolvable:$true] %s26
      %32 = dma.hbm_to_vmem [thread:$0]  %s1, 256, %s27, [#allocation7], 64, 64, 4
    $region9: #{tpu_custom_call.1} parent=1 // pred_fallthru
      _
    // Predicated region
    $region10: #{tpu_custom_call.1} parent=1 // pred_check
      _
    $region11: #{tpu_custom_call.1} parent=1 // pred_check_branch
      %34 = sbr.rel (0) target = $region13
    $region12: #{tpu_custom_call.1} parent=1 // pred_region
      _
    $region13: #{tpu_custom_call.1} parent=1 // pred_fallthru
      _
    // Predicated region
    $region14: #{tpu_custom_call.1} parent=1 // pred_check
      _
    $region15: #{tpu_custom_call.1} parent=1 // pred_check_branch
      %36 = sbr.rel (0) target = $region17
    $region16: #{tpu_custom_call.1} parent=1 // pred_region
      %37 = dma.done [#allocation4], 64
    $region17: #{tpu_custom_call.1} parent=1 // pred_fallthru
      _
    // Predicated region
    $region18: #{tpu_custom_call.1} parent=1 // pred_check
      _
    $region19: #{tpu_custom_call.1} parent=1 // pred_check_branch
      %39 = sbr.rel (0) target = $region21
    $region20: #{tpu_custom_call.1} parent=1 // pred_region
      %40 = dma.done [#allocation7], 256
    $region21: #{tpu_custom_call.1} parent=1 // pred_fallthru
      _
    %p42 = scmp.eq.s32.totalorder 0, 0
    // Predicated region
    $region22: #{tpu_custom_call.1} parent=1 // pred_check
      %p43 = pneg %p42
    $region23: #{tpu_custom_call.1} parent=1 // pred_check_branch
      %45 = sbr.rel (%p43) target = $region25
    $region24: #{tpu_custom_call.1} parent=1 // pred_region
      %46 = vst [vmem:[#allocation2] sm:$0xff] 0.0
    $region25: #{tpu_custom_call.1} parent=1 // pred_fallthru
      _
    %v47 = vld [vmem:[#allocation2] sm:$0xff]
    %v48 = vld [vmem:[#allocation3] sm:$0xf]
    %v49 = vld [vmem:[#allocation6] sm:$0xf]
    %v50 = vld [vmem:[#allocation6 + $0x4] sm:$0xf]
    %v51 = vld [vmem:[#allocation6 + $0x8] sm:$0xf]
    %v52 = vld [vmem:[#allocation6 + $0xc] sm:$0xf]
    %v57 = vunpack.c.l.b16 %v49
    %v58 = vunpack.c.l.b16 %v50
    %v59 = vunpack.c.l.b16 %v51
    %v60 = vunpack.c.l.b16 %v52
    %v61 = vpack.c.b16 %v58, %v57
    %v62 = vpack.c.b16 %v60, %v59
    %vm65 = vcmask 261120
    %v67 = vsel %vm65, %v48, 0
    %69 = vmatprep.subr.bf16.mxu0 0
    %70 = vmatpush1.bf16.msra.mxu0 0
    %71 = vmatprep.subr.bf16.mxu0 0
    %72 = vmatpush1.bf16.msra.mxu0 0
    %73 = vmatprep.subr.bf16.mxu0 0
    %74 = vmatpush1.bf16.msra.mxu0 0
    %75 = vmatprep.subr.bf16.mxu0 0
    %76 = vmatpush1.bf16.msra.mxu0 0
    %77 = vmatprep.subr.bf16.mxu0 0
    %78 = vmatpush1.bf16.msra.mxu0 0
    %79 = vmatprep.subr.bf16.mxu0 0
    %80 = vmatpush1.bf16.msra.mxu0 0
    %81 = vmatprep.subr.bf16.mxu0 0
    %82 = vmatpush1.bf16.msra.mxu0 %v62
    %83 = vmatprep.subr.bf16.mxu0 0
    %84 = vmatpush1.bf16.msra.mxu0 %v61
    %85 = vmatprep.subr.bf16.mxu0 0
    %86 = vmatpush2.bf16.msra.mxu0 0
    %87 = vmatprep.subr.bf16.mxu0 0
    %88 = vmatpush2.bf16.msra.mxu0 0
    %89 = vmatprep.subr.bf16.mxu0 0
    %90 = vmatpush2.bf16.msra.mxu0 0
    %91 = vmatprep.subr.bf16.mxu0 0
    %92 = vmatpush2.bf16.msra.mxu0 0
    %93 = vmatprep.subr.bf16.mxu0 0
    %94 = vmatpush2.bf16.msra.mxu0 0
    %95 = vmatprep.subr.bf16.mxu0 0
    %96 = vmatpush2.bf16.msra.mxu0 0
    %97 = vmatprep.subr.bf16.mxu0 0
    %98 = vmatpush2.bf16.msra.mxu0 0
    %99 = vmatprep.subr.bf16.mxu0 0
    %100 = vmatpush2.bf16.msra.mxu0 0
    %101 = vmatprep.mubr.bf16.mxu0 0
    %102 = vmatmul.mubr.bf16.gmra.mxu0 %v67
    %v103 = vpop.f32.mrf.mxu0
    %v104 = vadd.f32 0.0, %v103
    %v105 = vpop.f32.mrf.mxu0
    %v106 = vpop.f32.mrf.mxu0
    %v107 = vpop.f32.mrf.mxu0
    %108 = vdwg.mxu0
    %v109 = vadd.f32 %v47, %v104
    %110 = vst [vmem:[#allocation2] sm:$0xff] %v109
    // Predicated region
    $region26: #{tpu_custom_call.1} parent=1 // pred_check
      %p111 = pneg %p42
    $region27: #{tpu_custom_call.1} parent=1 // pred_check_branch
      %113 = sbr.rel (%p111) target = $region29
    $region28: #{tpu_custom_call.1} parent=1 // pred_region
      %v114 = vld [vmem:[#allocation2] sm:$0xff]
      %v115 = vld [vmem:[%s2] sm:$0x1]
      %v117 = vlaneseq
      %v118 = vshrl.u32 %v117, 7
      %v119 = vsub.s32 0, %v118
      %v120 = vrot.slane %v115, %v119
      %v122 = vadd.f32 %v114, %v120
      %v123 = vmax.f32 %v122, 0.0
      %124 = vst [vmem:[#allocation8] sm:$0xff] %v123
    $region29: #{tpu_custom_call.1} parent=1 // pred_fallthru
      _
    // Predicated region
    $region30: #{tpu_custom_call.1} parent=1 // pred_check
      _
    $region31: #{tpu_custom_call.1} parent=1 // pred_check_branch
      %126 = sbr.rel (0) target = $region33
    $region32: #{tpu_custom_call.1} parent=1 // pred_region
      %s128 = ssub.s32 128, 128
      %129 = vsyncadd [#allocation5], %s128
      %s131 = sshll.u32 [#allocation8], 4
      %s132 = int_to_ptr.vmem [resolvable:$true] %s131
      %134 = dma.vmem_to_hbm [thread:$0]  %s132, 128, %s3, [#allocation5]
    $region33: #{tpu_custom_call.1} parent=1 // pred_fallthru
      _
    // Predicated region
    $region34: #{tpu_custom_call.1} parent=1 // pred_check
      _
    $region35: #{tpu_custom_call.1} parent=1 // pred_check_branch
      %136 = sbr.rel (0) target = $region37
    $region36: #{tpu_custom_call.1} parent=1 // pred_region
      %137 = dma.done [#allocation5], 128
    $region37: #{tpu_custom_call.1} parent=1 // pred_fallthru
      _
    %138 = vsyncpa [#allocation4], 1
    %139 = vsyncpa [#allocation7], 1
    %140 = vsyncpa [#allocation5], 1

</llo_original>
